<compile_context>
chip_gen: v7x
topology: tpu7x:2x2x1
jax: 0.10.0
libtpu: 0.0.40
codegen_flags: <defaults>
</compile_context>

<pallas_src>
import functools

import jax
import jax.numpy as jnp
import numpy as np
from jax.experimental import pallas as pl
from jax.experimental.pallas import tpu as pltpu

EPS = 1e-5      # nn.BatchNorm2d default eps


def _round_up(x, m):
    return (x + m - 1) // m * m


def _fused_kernel(x_ref, w_ref, g_ref, b_ref, o_ref,
                  sum_ref, sumsq_ref, scale_ref, shift_ref,
                  *, nb, inv_count):
    """grid = (2 phases, N/nb image chunks); all refs f32.

    x_ref: (nb, 9*Cin, HW)  transposed im2col patches for this chunk
    w_ref: (Cpad, 9*Cin)    conv weights, channel-major
    g_ref, b_ref: (Cpad, 1) BN gamma / beta
    o_ref: (nb, Cpad, HW)   NCHW-ordered output
    """
    phase = pl.program_id(0)          # 0: batch stats, 1: normalize + ReLU
    step = pl.program_id(1)           # image-chunk index
    last = pl.num_programs(1) - 1

    @pl.when(jnp.logical_and(phase == 0, step == 0))
    def _init():
        sum_ref[...] = jnp.zeros_like(sum_ref)
        sumsq_ref[...] = jnp.zeros_like(sumsq_ref)

    for b in range(nb):
        # One fused K = 9*Cin MXU dot per image; result is channel-major
        # (Cpad, HW), i.e. already NCHW-ordered.
        acc = jnp.dot(w_ref[...], x_ref[b], preferred_element_type=jnp.float32)

        @pl.when(phase == 0)
        def _accumulate(acc=acc):
            sum_ref[...] += jnp.sum(acc, axis=1, keepdims=True)
            sumsq_ref[...] += jnp.sum(acc * acc, axis=1, keepdims=True)

        @pl.when(phase == 1)
        def _store(acc=acc, b=b):
            o_ref[b] = jnp.maximum(acc * scale_ref[...] + shift_ref[...],
                                   0.0).astype(o_ref.dtype)

    @pl.when(jnp.logical_and(phase == 0, step == last))
    def _finalize():
        mean = sum_ref[...] * inv_count
        var = sumsq_ref[...] * inv_count - mean * mean        # biased variance
        scale = g_ref[...] * jax.lax.rsqrt(var + EPS)
        scale_ref[...] = scale
        shift_ref[...] = b_ref[...] - mean * scale


def conv_batch_norm(x_nchw, w_hwio, bias, gamma, beta, *, images_per_step=8):
    """Forward pass of ConvBatchNorm. x_nchw: (N, Cin, H, W) float32."""
    N, Cin, H, W = x_nchw.shape
    KH, KW, _, Cout = w_hwio.shape
    del bias  # cancels exactly under training-mode BN (mean subtraction)

    HW = H * W
    K = KH * KW * Cin                      # fused contraction dim (= 36 here)
    Cpad = _round_up(Cout, 8)              # sublane-aligned output channels

    Nb = max(1, min(images_per_step, N))   # images per grid step
    G = pl.cdiv(N, Nb)
    Npad = G * Nb

    # ---- glue (plain JAX, all tiny): transposed im2col + weight reshape ----
    xp = jnp.pad(x_nchw, ((0, 0), (0, 0), (1, 1), (1, 1)))     # (N,Cin,H+2,W+2)
    taps = [xp[:, :, kh:kh + H, kw:kw + W]
            for kh in range(KH) for kw in range(KW)]           # 9 x (N,Cin,H,W)
    patches = jnp.stack(taps, axis=1).reshape(N, K, HW)        # (N, 9*Cin, HW)
    if Npad != N:
        # Zero-padded images contribute exactly 0 to sum/sumsq (bias dropped),
        # so stats stay correct with inv_count based on the real N.
        patches = jnp.pad(patches, ((0, Npad - N), (0, 0), (0, 0)))

    w_t = jnp.pad(w_hwio.reshape(K, Cout).T, ((0, Cpad - Cout), (0, 0)))
    gamma_c = jnp.pad(gamma, (0, Cpad - Cout)).reshape(Cpad, 1)
    beta_c = jnp.pad(beta, (0, Cpad - Cout)).reshape(Cpad, 1)

    inv_count = 1.0 / float(N * H * W)
    flops = 2 * 2 * Npad * HW * K * Cpad                       # both phases
    bytes_accessed = 4 * (2 * Npad * K * HW + Cpad * K + 2 * Cpad
                          + Npad * Cpad * HW)

    # Output index map: during phase 0 (p == 0) every step maps to block 0 and
    # is never stored, so no garbage ever reaches HBM; phase 1 writes block s.
    out_spec = pl.BlockSpec((Nb, Cpad, HW), lambda p, s: (s * p, 0, 0))

    y = pl.pallas_call(
        functools.partial(_fused_kernel, nb=Nb, inv_count=inv_count),
        out_shape=jax.ShapeDtypeStruct((Npad, Cpad, HW), jnp.float32),
        grid_spec=pltpu.PrefetchScalarGridSpec(
            num_scalar_prefetch=0,
            grid=(2, G),
            in_specs=[pl.BlockSpec((Nb, K, HW), lambda p, s: (s, 0, 0)),
                      pl.BlockSpec((Cpad, K), lambda p, s: (0, 0)),
                      pl.BlockSpec((Cpad, 1), lambda p, s: (0, 0)),
                      pl.BlockSpec((Cpad, 1), lambda p, s: (0, 0))],
            out_specs=out_spec,
            scratch_shapes=[pltpu.VMEM((Cpad, 1), jnp.float32)] * 4),
        compiler_params=pltpu.CompilerParams(
            dimension_semantics=("arbitrary", "arbitrary")),
        cost_estimate=pl.CostEstimate(flops=flops, transcendentals=Cpad,
                                      bytes_accessed=bytes_accessed),
    )(patches, w_t, gamma_c, beta_c)

    # Already channel-major: just drop padding and give it its 4-D shape.
    return y[:N, :Cout].reshape(N, Cout, H, W)


def reference(x_nchw, w_hwio, bias, gamma, beta):
    """Pure-JAX reference for verification (includes the conv bias)."""
    x = jnp.transpose(x_nchw, (0, 2, 3, 1))
    y = jax.lax.conv_general_dilated(
        x, w_hwio, window_strides=(1, 1), padding="SAME",
        dimension_numbers=("NHWC", "HWIO", "NHWC"))
    y = y + bias
    mean = jnp.mean(y, axis=(0, 1, 2), keepdims=True)
    var = jnp.mean(jnp.square(y - mean), axis=(0, 1, 2), keepdims=True)
    y = (y - mean) * jax.lax.rsqrt(var + EPS) * gamma + beta
    y = jnp.maximum(y, 0.0)
    return jnp.transpose(y, (0, 3, 1, 2))


if __name__ == "__main__":
    N, Cin, Cout, H, W = 2, 4, 8, 16, 16

    key = jax.random.PRNGKey(0)
    k1, k2, k3 = jax.random.split(key, 3)

    x = jax.random.normal(k1, (N, Cin, H, W), dtype=jnp.float32)

    # Deterministic parameter init (Conv2d-style uniform bounds).
    fan_in = Cin * 3 * 3
    bound = 1.0 / float(np.sqrt(fan_in))
    w_hwio = jax.random.uniform(k2, (3, 3, Cin, Cout), jnp.float32, -bound, bound)
    bias = jax.random.uniform(k3, (Cout,), jnp.float32, -bound, bound)
    # Freshly-constructed BatchNorm2d: weight=1, bias=0.
    gamma = jnp.ones((Cout,), jnp.float32)
    beta = jnp.zeros((Cout,), jnp.float32)

    fwd = jax.jit(conv_batch_norm)
    out = jax.block_until_ready(fwd(x, w_hwio, bias, gamma, beta))
    ref = jax.block_until_ready(reference(x, w_hwio, bias, gamma, beta))

    assert out.shape == (N, Cout, H, W), out.shape
    err = float(jnp.max(jnp.abs(out - ref)))
    assert jnp.allclose(out, ref, atol=3e-3, rtol=3e-3), err
    print("KERNEL_OK")
</pallas_src>

<mosaic_0001>
module attributes {stable_mosaic.version = 11 : i64} {
  func.func @_fused_kernel(%arg0: i32, %arg1: i32, %arg2: memref<2x36x256xf32, #tpu.memory_space<vmem>>, %arg3: memref<8x36xf32, #tpu.memory_space<vmem>>, %arg4: memref<8x1xf32, #tpu.memory_space<vmem>>, %arg5: memref<8x1xf32, #tpu.memory_space<vmem>>, %arg6: memref<2x8x256xf32, #tpu.memory_space<vmem>>, %arg7: memref<8x1xf32, #tpu.memory_space<vmem>>, %arg8: memref<8x1xf32, #tpu.memory_space<vmem>>, %arg9: memref<8x1xf32, #tpu.memory_space<vmem>>, %arg10: memref<8x1xf32, #tpu.memory_space<vmem>>) attributes {dimension_semantics = [#tpu.dimension_semantics<arbitrary>, #tpu.dimension_semantics<arbitrary>], iteration_bounds = array<i64: 2, 1>, scalar_prefetch = 0 : i64, scratch_operands = 4 : i64, tpu.core_type = #tpu.core_type<tc>, window_params = [{transform_indices = @transform_0, window_bounds = array<i64: 2, 36, 256>}, {pipeline_mode = #tpu.pipeline_mode<synchronous>, transform_indices = @transform_1, window_bounds = array<i64: 8, 36>}, {pipeline_mode = #tpu.pipeline_mode<synchronous>, transform_indices = @transform_2, window_bounds = array<i64: 8, 1>}, {pipeline_mode = #tpu.pipeline_mode<synchronous>, transform_indices = @transform_3, window_bounds = array<i64: 8, 1>}, {transform_indices = @transform_4, window_bounds = array<i64: 2, 8, 256>}]} {
    %c0_i32 = arith.constant 0 : i32
    %0 = arith.cmpi eq, %arg0, %c0_i32 : i32
    %c0_i32_0 = arith.constant 0 : i32
    %1 = arith.cmpi eq, %arg1, %c0_i32_0 : i32
    %2 = arith.andi %0, %1 : i1
    %3 = arith.extui %2 : i1 to i32
    %c0_i32_1 = arith.constant 0 : i32
    %4 = arith.cmpi ne, %3, %c0_i32_1 : i32
    scf.if %4 {
      %cst_21 = arith.constant 0.000000e+00 : f32
      %30 = vector.broadcast %cst_21 : f32 to vector<8x1xf32>
      %c0_22 = arith.constant 0 : index
      %c0_23 = arith.constant 0 : index
      %31 = vector.load %arg7[%c0_22, %c0_23] : memref<8x1xf32, #tpu.memory_space<vmem>>, vector<8x1xf32>
      tpu.vector_store %arg7[%c0_22, %c0_23], %30 {strides = array<i32>} : memref<8x1xf32, #tpu.memory_space<vmem>>, vector<8x1xf32>,
      %cst_24 = arith.constant 0.000000e+00 : f32
      %32 = vector.broadcast %cst_24 : f32 to vector<8x1xf32>
      %c0_25 = arith.constant 0 : index
      %c0_26 = arith.constant 0 : index
      %33 = vector.load %arg8[%c0_25, %c0_26] : memref<8x1xf32, #tpu.memory_space<vmem>>, vector<8x1xf32>
      tpu.vector_store %arg8[%c0_25, %c0_26], %32 {strides = array<i32>} : memref<8x1xf32, #tpu.memory_space<vmem>>, vector<8x1xf32>,
    } else {
    }
    %c0 = arith.constant 0 : index
    %c0_2 = arith.constant 0 : index
    %5 = vector.load %arg3[%c0, %c0_2] : memref<8x36xf32, #tpu.memory_space<vmem>>, vector<8x36xf32>
    %c0_3 = arith.constant 0 : index
    %c0_4 = arith.constant 0 : index
    %c0_5 = arith.constant 0 : index
    %6 = vector.load %arg2[%c0_3, %c0_4, %c0_5] : memref<2x36x256xf32, #tpu.memory_space<vmem>>, vector<1x36x256xf32>
    %7 = vector.shape_cast %6 : vector<1x36x256xf32> to vector<36x256xf32>
    %cst = arith.constant dense<0.000000e+00> : vector<8x256xf32>
    %8 = tpu.matmul %5, %7, %cst {dimension_numbers = #tpu.dot_dimension_numbers<[1], [0], [0], [1], [0, 0, 1, 1], [], []>} : vector<8x36xf32>, vector<36x256xf32>, vector<8x256xf32> -> vector<8x256xf32>
    %c0_i32_6 = arith.constant 0 : i32
    %9 = arith.cmpi eq, %arg0, %c0_i32_6 : i32
    %10 = arith.extui %9 : i1 to i32
    %c0_i32_7 = arith.constant 0 : i32
    %11 = arith.cmpi ne, %10, %c0_i32_7 : i32
    scf.if %11 {
      %c0_21 = arith.constant 0 : index
      %c0_22 = arith.constant 0 : index
      %30 = vector.load %arg7[%c0_21, %c0_22] : memref<8x1xf32, #tpu.memory_space<vmem>>, vector<8x1xf32>
      %cst_23 = arith.constant dense<0.000000e+00> : vector<8xf32>
      %31 = vector.multi_reduction <add>, %8, %cst_23 [1] : vector<8x256xf32> to vector<8xf32>
      %32 = vector.shape_cast %31 : vector<8xf32> to vector<8x1xf32>
      %33 = arith.addf %30, %32 : vector<8x1xf32>
      %c0_24 = arith.constant 0 : index
      %c0_25 = arith.constant 0 : index
      %34 = vector.load %arg7[%c0_24, %c0_25] : memref<8x1xf32, #tpu.memory_space<vmem>>, vector<8x1xf32>
      tpu.vector_store %arg7[%c0_24, %c0_25], %33 {strides = array<i32>} : memref<8x1xf32, #tpu.memory_space<vmem>>, vector<8x1xf32>,
      %c0_26 = arith.constant 0 : index
      %c0_27 = arith.constant 0 : index
      %35 = vector.load %arg8[%c0_26, %c0_27] : memref<8x1xf32, #tpu.memory_space<vmem>>, vector<8x1xf32>
      %36 = arith.mulf %8, %8 : vector<8x256xf32>
      %cst_28 = arith.constant dense<0.000000e+00> : vector<8xf32>
      %37 = vector.multi_reduction <add>, %36, %cst_28 [1] : vector<8x256xf32> to vector<8xf32>
      %38 = vector.shape_cast %37 : vector<8xf32> to vector<8x1xf32>
      %39 = arith.addf %35, %38 : vector<8x1xf32>
      %c0_29 = arith.constant 0 : index
      %c0_30 = arith.constant 0 : index
      %40 = vector.load %arg8[%c0_29, %c0_30] : memref<8x1xf32, #tpu.memory_space<vmem>>, vector<8x1xf32>
      tpu.vector_store %arg8[%c0_29, %c0_30], %39 {strides = array<i32>} : memref<8x1xf32, #tpu.memory_space<vmem>>, vector<8x1xf32>,
    } else {
    }
    %c1_i32 = arith.constant 1 : i32
    %12 = arith.cmpi eq, %arg0, %c1_i32 : i32
    %13 = arith.extui %12 : i1 to i32
    %c0_i32_8 = arith.constant 0 : i32
    %14 = arith.cmpi ne, %13, %c0_i32_8 : i32
    scf.if %14 {
      %c0_21 = arith.constant 0 : index
      %c0_22 = arith.constant 0 : index
      %30 = vector.load %arg9[%c0_21, %c0_22] : memref<8x1xf32, #tpu.memory_space<vmem>>, vector<8x1xf32>
      %31 = vector.broadcast %30 : vector<8x1xf32> to vector<8x256xf32>
      %32 = arith.mulf %8, %31 : vector<8x256xf32>
      %c0_23 = arith.constant 0 : index
      %c0_24 = arith.constant 0 : index
      %33 = vector.load %arg10[%c0_23, %c0_24] : memref<8x1xf32, #tpu.memory_space<vmem>>, vector<8x1xf32>
      %34 = vector.broadcast %33 : vector<8x1xf32> to vector<8x256xf32>
      %35 = arith.addf %32, %34 : vector<8x256xf32>
      %cst_25 = arith.constant 0.000000e+00 : f32
      %36 = vector.broadcast %cst_25 : f32 to vector<8x256xf32>
      %37 = arith.maximumf %35, %36 : vector<8x256xf32>
      %c0_26 = arith.constant 0 : index
      %c0_27 = arith.constant 0 : index
      %c0_28 = arith.constant 0 : index
      %38 = vector.load %arg6[%c0_26, %c0_27, %c0_28] : memref<2x8x256xf32, #tpu.memory_space<vmem>>, vector<1x8x256xf32>
      %39 = vector.shape_cast %38 : vector<1x8x256xf32> to vector<8x256xf32>
      %40 = vector.shape_cast %37 : vector<8x256xf32> to vector<1x8x256xf32>
      tpu.vector_store %arg6[%c0_26, %c0_27, %c0_28], %40 {strides = array<i32>} : memref<2x8x256xf32, #tpu.memory_space<vmem>>, vector<1x8x256xf32>,
    } else {
    }
    %c0_9 = arith.constant 0 : index
    %c0_10 = arith.constant 0 : index
    %15 = vector.load %arg3[%c0_9, %c0_10] : memref<8x36xf32, #tpu.memory_space<vmem>>, vector<8x36xf32>
    %c1 = arith.constant 1 : index
    %c0_11 = arith.constant 0 : index
    %c0_12 = arith.constant 0 : index
    %16 = vector.load %arg2[%c1, %c0_11, %c0_12] : memref<2x36x256xf32, #tpu.memory_space<vmem>>, vector<1x36x256xf32>
    %17 = vector.shape_cast %16 : vector<1x36x256xf32> to vector<36x256xf32>
    %cst_13 = arith.constant dense<0.000000e+00> : vector<8x256xf32>
    %18 = tpu.matmul %15, %17, %cst_13 {dimension_numbers = #tpu.dot_dimension_numbers<[1], [0], [0], [1], [0, 0, 1, 1], [], []>} : vector<8x36xf32>, vector<36x256xf32>, vector<8x256xf32> -> vector<8x256xf32>
    %c0_i32_14 = arith.constant 0 : i32
    %19 = arith.cmpi eq, %arg0, %c0_i32_14 : i32
    %20 = arith.extui %19 : i1 to i32
    %c0_i32_15 = arith.constant 0 : i32
    %21 = arith.cmpi ne, %20, %c0_i32_15 : i32
    scf.if %21 {
      %c0_21 = arith.constant 0 : index
      %c0_22 = arith.constant 0 : index
      %30 = vector.load %arg7[%c0_21, %c0_22] : memref<8x1xf32, #tpu.memory_space<vmem>>, vector<8x1xf32>
      %cst_23 = arith.constant dense<0.000000e+00> : vector<8xf32>
      %31 = vector.multi_reduction <add>, %18, %cst_23 [1] : vector<8x256xf32> to vector<8xf32>
      %32 = vector.shape_cast %31 : vector<8xf32> to vector<8x1xf32>
      %33 = arith.addf %30, %32 : vector<8x1xf32>
      %c0_24 = arith.constant 0 : index
      %c0_25 = arith.constant 0 : index
      %34 = vector.load %arg7[%c0_24, %c0_25] : memref<8x1xf32, #tpu.memory_space<vmem>>, vector<8x1xf32>
      tpu.vector_store %arg7[%c0_24, %c0_25], %33 {strides = array<i32>} : memref<8x1xf32, #tpu.memory_space<vmem>>, vector<8x1xf32>,
      %c0_26 = arith.constant 0 : index
      %c0_27 = arith.constant 0 : index
      %35 = vector.load %arg8[%c0_26, %c0_27] : memref<8x1xf32, #tpu.memory_space<vmem>>, vector<8x1xf32>
      %36 = arith.mulf %18, %18 : vector<8x256xf32>
      %cst_28 = arith.constant dense<0.000000e+00> : vector<8xf32>
      %37 = vector.multi_reduction <add>, %36, %cst_28 [1] : vector<8x256xf32> to vector<8xf32>
      %38 = vector.shape_cast %37 : vector<8xf32> to vector<8x1xf32>
      %39 = arith.addf %35, %38 : vector<8x1xf32>
      %c0_29 = arith.constant 0 : index
      %c0_30 = arith.constant 0 : index
      %40 = vector.load %arg8[%c0_29, %c0_30] : memref<8x1xf32, #tpu.memory_space<vmem>>, vector<8x1xf32>
      tpu.vector_store %arg8[%c0_29, %c0_30], %39 {strides = array<i32>} : memref<8x1xf32, #tpu.memory_space<vmem>>, vector<8x1xf32>,
    } else {
    }
    %c1_i32_16 = arith.constant 1 : i32
    %22 = arith.cmpi eq, %arg0, %c1_i32_16 : i32
    %23 = arith.extui %22 : i1 to i32
    %c0_i32_17 = arith.constant 0 : i32
    %24 = arith.cmpi ne, %23, %c0_i32_17 : i32
    scf.if %24 {
      %c0_21 = arith.constant 0 : index
      %c0_22 = arith.constant 0 : index
      %30 = vector.load %arg9[%c0_21, %c0_22] : memref<8x1xf32, #tpu.memory_space<vmem>>, vector<8x1xf32>
      %31 = vector.broadcast %30 : vector<8x1xf32> to vector<8x256xf32>
      %32 = arith.mulf %18, %31 : vector<8x256xf32>
      %c0_23 = arith.constant 0 : index
      %c0_24 = arith.constant 0 : index
      %33 = vector.load %arg10[%c0_23, %c0_24] : memref<8x1xf32, #tpu.memory_space<vmem>>, vector<8x1xf32>
      %34 = vector.broadcast %33 : vector<8x1xf32> to vector<8x256xf32>
      %35 = arith.addf %32, %34 : vector<8x256xf32>
      %cst_25 = arith.constant 0.000000e+00 : f32
      %36 = vector.broadcast %cst_25 : f32 to vector<8x256xf32>
      %37 = arith.maximumf %35, %36 : vector<8x256xf32>
      %c1_26 = arith.constant 1 : index
      %c0_27 = arith.constant 0 : index
      %c0_28 = arith.constant 0 : index
      %38 = vector.load %arg6[%c1_26, %c0_27, %c0_28] : memref<2x8x256xf32, #tpu.memory_space<vmem>>, vector<1x8x256xf32>
      %39 = vector.shape_cast %38 : vector<1x8x256xf32> to vector<8x256xf32>
      %40 = vector.shape_cast %37 : vector<8x256xf32> to vector<1x8x256xf32>
      tpu.vector_store %arg6[%c1_26, %c0_27, %c0_28], %40 {strides = array<i32>} : memref<2x8x256xf32, #tpu.memory_space<vmem>>, vector<1x8x256xf32>,
    } else {
    }
    %c0_i32_18 = arith.constant 0 : i32
    %25 = arith.cmpi eq, %arg0, %c0_i32_18 : i32
    %c0_i32_19 = arith.constant 0 : i32
    %26 = arith.cmpi eq, %arg1, %c0_i32_19 : i32
    %27 = arith.andi %25, %26 : i1
    %28 = arith.extui %27 : i1 to i32
    %c0_i32_20 = arith.constant 0 : i32
    %29 = arith.cmpi ne, %28, %c0_i32_20 : i32
    scf.if %29 {
      %c0_21 = arith.constant 0 : index
      %c0_22 = arith.constant 0 : index
      %30 = vector.load %arg7[%c0_21, %c0_22] : memref<8x1xf32, #tpu.memory_space<vmem>>, vector<8x1xf32>
      %cst_23 = arith.constant 0.001953125 : f32
      %31 = vector.broadcast %cst_23 : f32 to vector<8x1xf32>
      %32 = arith.mulf %30, %31 : vector<8x1xf32>
      %c0_24 = arith.constant 0 : index
      %c0_25 = arith.constant 0 : index
      %33 = vector.load %arg8[%c0_24, %c0_25] : memref<8x1xf32, #tpu.memory_space<vmem>>, vector<8x1xf32>
      %cst_26 = arith.constant 0.001953125 : f32
      %34 = vector.broadcast %cst_26 : f32 to vector<8x1xf32>
      %35 = arith.mulf %33, %34 : vector<8x1xf32>
      %36 = arith.mulf %32, %32 : vector<8x1xf32>
      %37 = arith.subf %35, %36 : vector<8x1xf32>
      %c0_27 = arith.constant 0 : index
      %c0_28 = arith.constant 0 : index
      %38 = vector.load %arg4[%c0_27, %c0_28] : memref<8x1xf32, #tpu.memory_space<vmem>>, vector<8x1xf32>
      %cst_29 = arith.constant 9.99999974E-6 : f32
      %39 = vector.broadcast %cst_29 : f32 to vector<8x1xf32>
      %40 = arith.addf %37, %39 : vector<8x1xf32>
      %41 = math.rsqrt %40 : vector<8x1xf32>
      %42 = arith.mulf %38, %41 : vector<8x1xf32>
      %c0_30 = arith.constant 0 : index
      %c0_31 = arith.constant 0 : index
      %43 = vector.load %arg9[%c0_30, %c0_31] : memref<8x1xf32, #tpu.memory_space<vmem>>, vector<8x1xf32>
      tpu.vector_store %arg9[%c0_30, %c0_31], %42 {strides = array<i32>} : memref<8x1xf32, #tpu.memory_space<vmem>>, vector<8x1xf32>,
      %c0_32 = arith.constant 0 : index
      %c0_33 = arith.constant 0 : index
      %44 = vector.load %arg5[%c0_32, %c0_33] : memref<8x1xf32, #tpu.memory_space<vmem>>, vector<8x1xf32>
      %45 = arith.mulf %32, %42 : vector<8x1xf32>
      %46 = arith.subf %44, %45 : vector<8x1xf32>
      %c0_34 = arith.constant 0 : index
      %c0_35 = arith.constant 0 : index
      %47 = vector.load %arg10[%c0_34, %c0_35] : memref<8x1xf32, #tpu.memory_space<vmem>>, vector<8x1xf32>
      tpu.vector_store %arg10[%c0_34, %c0_35], %46 {strides = array<i32>} : memref<8x1xf32, #tpu.memory_space<vmem>>, vector<8x1xf32>,
    } else {
    }
    return
  }
  func.func @transform_0(%arg0: i32, %arg1: i32) -> (i32, i32, i32) {
    %c0_i32 = arith.constant 0 : i32
    %c0_i32_0 = arith.constant 0 : i32
    %c0_i32_1 = arith.constant 0 : i32
    return %arg1, %c0_i32, %c0_i32_0 : i32, i32, i32
  }
  func.func @transform_1(%arg0: i32, %arg1: i32) -> (i32, i32) {
    %c0_i32 = arith.constant 0 : i32
    %c0_i32_0 = arith.constant 0 : i32
    %c0_i32_1 = arith.constant 0 : i32
    return %c0_i32, %c0_i32_0 : i32, i32
  }
  func.func @transform_2(%arg0: i32, %arg1: i32) -> (i32, i32) {
    %c0_i32 = arith.constant 0 : i32
    %c0_i32_0 = arith.constant 0 : i32
    %c0_i32_1 = arith.constant 0 : i32
    return %c0_i32, %c0_i32_0 : i32, i32
  }
  func.func @transform_3(%arg0: i32, %arg1: i32) -> (i32, i32) {
    %c0_i32 = arith.constant 0 : i32
    %c0_i32_0 = arith.constant 0 : i32
    %c0_i32_1 = arith.constant 0 : i32
    return %c0_i32, %c0_i32_0 : i32, i32
  }
  func.func @transform_4(%arg0: i32, %arg1: i32) -> (i32, i32, i32) {
    %0 = arith.muli %arg1, %arg0 : i32
    %c0_i32 = arith.constant 0 : i32
    %c0_i32_0 = arith.constant 0 : i32
    %c0_i32_1 = arith.constant 0 : i32
    return %0, %c0_i32, %c0_i32_0 : i32, i32, i32
  }
}

</mosaic_0001>

<llo_original>
// kernel: conv_batch_norm.1
$region0: #{conv_batch_norm.1}
  #allocation0 [shape = 'u32[]', space=smem, size = 0x4, offset = 0x4, fixed_abs, tag = 'smem constant byte address 0x4 - core index']
  #allocation1 [shape = 'u32[144,128]{1,0:T(1,128)}', space=vmem, size = 0x12000, scoped, tag = 'internal scratch']
  #allocation2 [shape = 'f32[8,1]{1,0:T(8,128)}', space=vmem, size = 0x1000, scoped, tag = 'scratch operand']
  #allocation3 [shape = 'f32[8,1]{1,0:T(8,128)}', space=vmem, size = 0x1000, scoped, tag = 'scratch operand']
  #allocation4 [shape = 'f32[8,1]{1,0:T(8,128)}', space=vmem, size = 0x1000, scoped, tag = 'scratch operand']
  #allocation5 [shape = 'f32[8,1]{1,0:T(8,128)}', space=vmem, size = 0x1000, scoped, tag = 'scratch operand']
  %s0 = inlined_call_operand.vmem [shape: f32[2,36,256], index: 0, kind: input, shape index: {}]
  %s1 = inlined_call_operand.vmem [shape: f32[8,36], index: 1, kind: input, shape index: {}]
  %s2 = inlined_call_operand.vmem [shape: f32[8,1], index: 2, kind: input, shape index: {}]
  %s3 = inlined_call_operand.vmem [shape: f32[8,1], index: 3, kind: input, shape index: {}]
  %s4 = inlined_call_operand.vmem [shape: f32[2,8,256], index: 4, kind: output, shape index: {}]
  %s5 = sld [smem:[#allocation0]]
  $region73: #{conv_batch_norm.1} parent=0
    _
  %s7 = ssub.s32 1, %s5
  %s8 = scalar_select 0, %s7, %s5
  loop: start=0, step=1, limit=4
  $region2: #{conv_batch_norm.1} parent=0 // loop_pre_header
    _
  $region3: #{conv_batch_norm.1} parent=0 // loop_header
    %s10 = sphi 0, %s14
    %p11 = scmp.ge.s32.totalorder %s10, 4
    %s17 = sphi 0, %s29
    %s18 = sphi 0, %s25
    %s19 = sphi 0, %s17
    %s20 = sphi 0, %s18
    %s21 = sphi 0, %s19
    %s22 = sphi 0, %s20
    %s32 = sphi 0, %s34
    %s35 = sphi 0, %s32
    %s36 = sphi 0, %s35
    %s52 = sphi 0, %s36
    %s56 = sphi 0, %s56
    %s58 = sphi 0, %s56
    %s59 = sphi 0, %s58
    %s73 = sphi 0, %s59
    %s77 = sphi 0, %s77
    %s79 = sphi 0, %s77
    %s80 = sphi 0, %s79
    %s94 = sphi 0, %s80
    %s98 = sphi 0, %s98
    %s100 = sphi 0, %s98
    %s101 = sphi 0, %s100
    %s115 = sphi 0, %s101
    %s123 = sphi 0, %s125
    %s126 = sphi 0, %s123
    %s127 = sphi 0, %s126
    %s143 = sphi 0, %s127
  $region4: #{conv_batch_norm.1} parent=0 // loop_header_branch
    %13 = sbr.rel (%p11) target = $region8
  $region5: #{conv_batch_norm.1} parent=0 // loop_body
    %s15 = ssub.s32 %s10, 1
    %s16 = ssub.s32 %s10, 2
    %s23 = sadd.s32 1, %s18
    %p24 = scmp.ge.s32.totalorder %s23, 1
    %s25 = scalar_select %p24, 0, %s23
    %s26 = sadd.s32 1, %s17
    %s27 = scalar_select %p24, %s26, %s17
    %p28 = scmp.ge.s32.totalorder %s27, 2
    %s29 = scalar_select %p28, 0, %s27
    %s30 = ssub.s32 %s18, %s25
    %p31 = scmp.eq.s32.totalorder %s30, 0
    %s33 = sadd.s32 %s32, 1
    %s34 = scalar_select %p31, %s32, %s33
    %p37 = pneg %p31
    %p38 = scmp.eq.s32.totalorder %s10, 1
    %p39 = por %p37, %p38
    %p40 = scmp.ne.s32.totalorder %s32, %s35
    %p41 = scmp.eq.s32.totalorder %s10, 0
    %p42 = por %p40, %p41
    %p43 = scmp.ne.s32.totalorder %s32, %s35
    %p44 = scmp.eq.s32.totalorder %s15, 1
    %p45 = por %p43, %p44
    %p46 = scmp.ne.s32.totalorder %s35, %s36
    %p47 = scmp.eq.s32.totalorder %s15, 0
    %p48 = por %p46, %p47
    %p49 = scmp.ne.s32.totalorder %s35, %s36
    %p50 = scmp.eq.s32.totalorder %s16, 1
    %p51 = por %p49, %p50
    %p53 = scmp.ne.s32.totalorder %s36, %s52
    %p54 = scmp.eq.s32.totalorder %s16, 0
    %p55 = por %p53, %p54
    %s57 = sadd.s32 %s56, 1
    %p60 = scmp.eq.s32.totalorder %s10, 1
    %p61 = scmp.ne.s32.totalorder %s56, %s58
    %p62 = scmp.eq.s32.totalorder %s10, 0
    %p63 = por %p61, %p62
    %p64 = scmp.ne.s32.totalorder %s56, %s58
    %p65 = scmp.eq.s32.totalorder %s15, 1
    %p66 = por %p64, %p65
    %p67 = scmp.ne.s32.totalorder %s58, %s59
    %p68 = scmp.eq.s32.totalorder %s15, 0
    %p69 = por %p67, %p68
    %p70 = scmp.ne.s32.totalorder %s58, %s59
    %p71 = scmp.eq.s32.totalorder %s16, 1
    %p72 = por %p70, %p71
    %p74 = scmp.ne.s32.totalorder %s59, %s73
    %p75 = scmp.eq.s32.totalorder %s16, 0
    %p76 = por %p74, %p75
    %s78 = sadd.s32 %s77, 1
    %p81 = scmp.eq.s32.totalorder %s10, 1
    %p82 = scmp.ne.s32.totalorder %s77, %s79
    %p83 = scmp.eq.s32.totalorder %s10, 0
    %p84 = por %p82, %p83
    %p85 = scmp.ne.s32.totalorder %s77, %s79
    %p86 = scmp.eq.s32.totalorder %s15, 1
    %p87 = por %p85, %p86
    %p88 = scmp.ne.s32.totalorder %s79, %s80
    %p89 = scmp.eq.s32.totalorder %s15, 0
    %p90 = por %p88, %p89
    %p91 = scmp.ne.s32.totalorder %s79, %s80
    %p92 = scmp.eq.s32.totalorder %s16, 1
    %p93 = por %p91, %p92
    %p95 = scmp.ne.s32.totalorder %s80, %s94
    %p96 = scmp.eq.s32.totalorder %s16, 0
    %p97 = por %p95, %p96
    %s99 = sadd.s32 %s98, 1
    %p102 = scmp.eq.s32.totalorder %s10, 1
    %p103 = scmp.ne.s32.totalorder %s98, %s100
    %p104 = scmp.eq.s32.totalorder %s10, 0
    %p105 = por %p103, %p104
    %p106 = scmp.ne.s32.totalorder %s98, %s100
    %p107 = scmp.eq.s32.totalorder %s15, 1
    %p108 = por %p106, %p107
    %p109 = scmp.ne.s32.totalorder %s100, %s101
    %p110 = scmp.eq.s32.totalorder %s15, 0
    %p111 = por %p109, %p110
    %p112 = scmp.ne.s32.totalorder %s100, %s101
    %p113 = scmp.eq.s32.totalorder %s16, 1
    %p114 = por %p112, %p113
    %p116 = scmp.ne.s32.totalorder %s101, %s115
    %p117 = scmp.eq.s32.totalorder %s16, 0
    %p118 = por %p116, %p117
    %s119 = smul.u32 %s18, %s17
    %s120 = smul.u32 %s25, %s29
    %s121 = ssub.s32 %s119, %s120
    %p122 = scmp.eq.s32.totalorder %s121, 0
    %s124 = sadd.s32 %s123, 1
    %s125 = scalar_select %p122, %s123, %s124
    %p128 = pneg %p122
    %p129 = scmp.eq.s32.totalorder %s10, 1
    %p130 = por %p128, %p129
    %p131 = scmp.ne.s32.totalorder %s123, %s126
    %p132 = scmp.eq.s32.totalorder %s10, 0
    %p133 = por %p131, %p132
    %p134 = scmp.ne.s32.totalorder %s123, %s126
    %p135 = scmp.eq.s32.totalorder %s15, 1
    %p136 = por %p134, %p135
    %p137 = scmp.ne.s32.totalorder %s126, %s127
    %p138 = scmp.eq.s32.totalorder %s15, 0
    %p139 = por %p137, %p138
    %p140 = scmp.ne.s32.totalorder %s126, %s127
    %p141 = scmp.eq.s32.totalorder %s16, 1
    %p142 = por %p140, %p141
    %p144 = scmp.ne.s32.totalorder %s127, %s143
    %p145 = scmp.eq.s32.totalorder %s16, 0
    %p146 = por %p144, %p145
    %p147 = scmp.le.s32.totalorder 1, %s10
    %p148 = scmp.lt.s32.totalorder %s10, 3
    %p149 = pnand %p147, %p148
    %p150 = pneg %p149
    // Predicated region
    $region9: #{conv_batch_norm.1} parent=5 // pred_check
      _
    $region10: #{conv_batch_norm.1} parent=5 // pred_check_branch
      %152 = sbr.rel (%p149) target = $region12
    $region11: #{conv_batch_norm.1} parent=5 // pred_region
      %s153 = ssub.s32 %s10, 1
      // Predicated region
      $region13: #{conv_batch_norm.1} parent=11 // pred_check
        %p154 = pneg %p48
      $region14: #{conv_batch_norm.1} parent=11 // pred_check_branch
        %156 = sbr.rel (%p154) target = $region16
      $region15: #{conv_batch_norm.1} parent=11 // pred_region
        %s157 = smul.u32 2, %s20
        %p158 = scmp.lt.s32.totalorder %s157, 1
        %s159 = scalar_select %p158, %s157, 1
        %s160 = smul.addr %s159, 10
        %s161 = smul.addr %s160, 8
        %s162 = scalar_lea.vmem %s0, %s161
        %s163 = smul.u32 2, %s20
      $region16: #{conv_batch_norm.1} parent=11 // pred_fallthru
        _
      // Predicated region
      $region17: #{conv_batch_norm.1} parent=11 // pred_check
        %p164 = pneg %p69
      $region18: #{conv_batch_norm.1} parent=11 // pred_check_branch
        %166 = sbr.rel (%p164) target = $region20
      $region19: #{conv_batch_norm.1} parent=11 // pred_region
        _
      $region20: #{conv_batch_norm.1} parent=11 // pred_fallthru
        _
      // Predicated region
      $region21: #{conv_batch_norm.1} parent=11 // pred_check
        %p167 = pneg %p90
      $region22: #{conv_batch_norm.1} parent=11 // pred_check_branch
        %169 = sbr.rel (%p167) target = $region24
      $region23: #{conv_batch_norm.1} parent=11 // pred_region
        _
      $region24: #{conv_batch_norm.1} parent=11 // pred_fallthru
        _
      // Predicated region
      $region25: #{conv_batch_norm.1} parent=11 // pred_check
        %p170 = pneg %p111
      $region26: #{conv_batch_norm.1} parent=11 // pred_check_branch
        %172 = sbr.rel (%p170) target = $region28
      $region27: #{conv_batch_norm.1} parent=11 // pred_region
        _
      $region28: #{conv_batch_norm.1} parent=11 // pred_fallthru
        _
    $region12: #{conv_batch_norm.1} parent=5 // pred_fallthru
      _
    %p173 = scmp.lt.s32.totalorder %s10, 2
    // Predicated region
    $region29: #{conv_batch_norm.1} parent=5 // pred_check
      %p174 = pneg %p173
    $region30: #{conv_batch_norm.1} parent=5 // pred_check_branch
      %176 = sbr.rel (%p174) target = $region32
    $region31: #{conv_batch_norm.1} parent=5 // pred_region
      _
    $region32: #{conv_batch_norm.1} parent=5 // pred_fallthru
      _
    %p177 = scmp.le.s32.totalorder 1, %s10
    %p178 = scmp.lt.s32.totalorder %s10, 3
    %p179 = pnand %p177, %p178
    %p180 = pneg %p179
    // Predicated region
    $region33: #{conv_batch_norm.1} parent=5 // pred_check
      _
    $region34: #{conv_batch_norm.1} parent=5 // pred_check_branch
      %182 = sbr.rel (%p179) target = $region36
    $region35: #{conv_batch_norm.1} parent=5 // pred_region
      %s183 = ssub.s32 %s10, 1
      %s184 = smul.u32 2, %s20
      %p185 = scmp.lt.s32.totalorder %s184, 1
      %s186 = scalar_select %p185, %s184, 1
      %s187 = smul.addr %s186, 10
      %s188 = smul.addr %s187, 8
      %s189 = scalar_lea.vmem %s0, %s188
      %p190 = pneg %p48
      %p191 = pneg %p45
      %p192 = pneg %p69
      %p193 = pneg %p66
      %p194 = pneg %p90
      %p195 = pneg %p87
      %p196 = pneg %p111
      %p197 = pneg %p108
      %p198 = pneg %p139
      %p199 = pneg %p136
      %s200 = smul.u32 %s20, %s19
      %s201 = smul.u32 2, %s200
      %p202 = scmp.lt.s32.totalorder %s201, 1
      %s203 = scalar_select %p202, %s201, 1
      %s204 = smul.addr %s203, 2
      %s205 = smul.addr %s204, 8
      %s206 = scalar_lea.vmem %s4, %s205
      %s207 = smul.u32 2, %s20
      %p208 = scmp.lt.s32.totalorder %s207, 1
      %s209 = scalar_select %p208, %s207, 1
      %s210 = smul.addr %s209, 10
      %s211 = smul.addr %s210, 8
      %s212 = scalar_lea.vmem %s0, %s211
      %s213 = smul.u32 2, %s20
      %s214 = smul.u32 %s20, %s19
      %s215 = smul.u32 2, %s214
      %p216 = scmp.lt.s32.totalorder %s215, 1
      %s217 = scalar_select %p216, %s215, 1
      %s218 = smul.addr %s217, 2
      %s219 = smul.addr %s218, 8
      %s220 = scalar_lea.vmem %s4, %s219
      %s221 = smul.u32 %s20, %s19
      %s222 = smul.u32 2, %s221
      %p223 = scmp.eq.s32.totalorder %s19, 0
      %p224 = scmp.eq.s32.totalorder %s20, 0
      %p225 = pnand %p223, %p224
      %p226 = pneg %p225
      // Predicated region
      $region37: #{conv_batch_norm.1} parent=35 // pred_check
        _
      $region38: #{conv_batch_norm.1} parent=35 // pred_check_branch
        %228 = sbr.rel (%p225) target = $region40
      $region39: #{conv_batch_norm.1} parent=35 // pred_region
        %vm229 = vcmask 7168
        %230 = vst.msk [vmem:[#allocation2] sm:$0xff] %vm229, 0.0
        %231 = vst.msk [vmem:[#allocation3] sm:$0xff] %vm229, 0.0
      $region40: #{conv_batch_norm.1} parent=35 // pred_fallthru
        _
      %v232 = vld [vmem:[%s1] sm:$0xff]
      %v233 = vld [vmem:[%s212] sm:$0xff]
      %v234 = vld [vmem:[%s212 + $0x8] sm:$0xff]
      %v235 = vld [vmem:[%s212 + $0x10] sm:$0xff]
      %v236 = vld [vmem:[%s212 + $0x18] sm:$0xff]
      %v237 = vld [vmem:[%s212 + $0x20] sm:$0xff]
      %v238 = vld [vmem:[%s212 + $0x28] sm:$0xff]
      %v239 = vld [vmem:[%s212 + $0x30] sm:$0xff]
      %v240 = vld [vmem:[%s212 + $0x38] sm:$0xff]
      %v241 = vld [vmem:[%s212 + $0x40] sm:$0xf]
      %v242 = vld [vmem:[%s212 + $0x48] sm:$0xf]
      %vm243 = vcmask 293888
      %v245 = vsel %vm243, %v232, 0
      %vm247 = vcmask 1043456
      %v249 = vsel %vm247, %v241, 0
      %v252 = vsel %vm247, %v242, 0
      %254 = vmatprep.subr.mxu0 %v234
      %255 = vmatpush1.msra.mxu0 %v233
      %256 = vmatprep.subr.mxu0 %v236
      %257 = vmatpush1.msra.mxu0 %v235
      %258 = vmatprep.subr.mxu0 %v238
      %259 = vmatpush1.msra.mxu0 %v237
      %260 = vmatprep.subr.mxu0 %v240
      %261 = vmatpush1.msra.mxu0 %v239
      %262 = vmatprep.subr.mxu0 %v252
      %263 = vmatpush1.msra.mxu0 %v249
      %264 = vmatprep.subr.mxu0 0.0
      %265 = vmatpush1.msra.mxu0 0.0
      %266 = vmatprep.subr.mxu0 0.0
      %267 = vmatpush1.msra.mxu0 0.0
      %268 = vmatprep.subr.mxu0 0.0
      %269 = vmatpush1.msra.mxu0 0.0
      %270 = vmatprep.subr.mxu0 0.0
      %271 = vmatpush1.msra.mxu0 0.0
      %272 = vmatprep.subr.mxu0 0.0
      %273 = vmatpush1.msra.mxu0 0.0
      %274 = vmatprep.subr.mxu0 0.0
      %275 = vmatpush1.msra.mxu0 0.0
      %276 = vmatprep.subr.mxu0 0.0
      %277 = vmatpush1.msra.mxu0 0.0
      %278 = vmatprep.subr.mxu0 0.0
      %279 = vmatpush1.msra.mxu0 0.0
      %280 = vmatprep.subr.mxu0 0.0
      %281 = vmatpush1.msra.mxu0 0.0
      %282 = vmatprep.subr.mxu0 0.0
      %283 = vmatpush1.msra.mxu0 0.0
      %284 = vmatprep.subr.mxu0 0.0
      %285 = vmatpush1.msra.mxu0 0.0
      %286 = vmatprep.subr.mxu0 0.0
      %287 = vmatpush1.msra.mxu0 0.0
      %288 = vmatprep.subr.mxu0 0.0
      %289 = vmatpush1.msra.mxu0 0.0
      %290 = vmatprep.subr.mxu0 0.0
      %291 = vmatpush1.msra.mxu0 0.0
      %292 = vmatprep.subr.mxu0 0.0
      %293 = vmatpush1.msra.mxu0 0.0
      %294 = vmatprep.subr.mxu0 0.0
      %295 = vmatpush1.msra.mxu0 0.0
      %296 = vmatprep.subr.mxu0 0.0
      %297 = vmatpush1.msra.mxu0 0.0
      %298 = vmatprep.subr.mxu0 0.0
      %299 = vmatpush1.msra.mxu0 0.0
      %300 = vmatprep.subr.mxu0 0.0
      %301 = vmatpush1.msra.mxu0 0.0
      %302 = vmatprep.subr.mxu0 0.0
      %303 = vmatpush1.msra.mxu0 0.0
      %304 = vmatprep.subr.mxu0 0.0
      %305 = vmatpush1.msra.mxu0 0.0
      %306 = vmatprep.subr.mxu0 0.0
      %307 = vmatpush1.msra.mxu0 0.0
      %308 = vmatprep.subr.mxu0 0.0
      %309 = vmatpush1.msra.mxu0 0.0
      %310 = vmatprep.subr.mxu0 0.0
      %311 = vmatpush1.msra.mxu0 0.0
      %312 = vmatprep.subr.mxu0 0.0
      %313 = vmatpush1.msra.mxu0 0.0
      %314 = vmatprep.subr.mxu0 0.0
      %315 = vmatpush1.msra.mxu0 0.0
      %316 = vmatprep.subr.mxu0 0.0
      %317 = vmatpush1.msra.mxu0 0.0
      %318 = vmatprep.mubr.f32.mxu0 0.0
      %319 = vmatmul.mubr.f32.gmra.mrb[0].mxu0 %v245
      %v320 = vpop.f32.mrb[0].mxu0
      %v321 = vadd.f32 0.0, %v320
      %v322 = vpop.f32.mrb[0].mxu0
      %v323 = vadd.f32 0.0, %v322
      %324 = vdwg.mxu0
      // Predicated region
      $region41: #{conv_batch_norm.1} parent=35 // pred_check
        %p325 = pneg %p223
      $region42: #{conv_batch_norm.1} parent=35 // pred_check_branch
        %327 = sbr.rel (%p325) target = $region44
      $region43: #{conv_batch_norm.1} parent=35 // pred_region
        %v328 = vld [vmem:[#allocation2] sm:$0xff]
        %v329 = vadd.f32 %v321, %v323
        %330 = vadd.xlane.f32.xlu0 %v329
        %v331 = vpop.xlane.xlu0 %330
        %v332 = vadd.f32 %v328, %v331
        %vm333 = vcmask 7168
        %334 = vst.msk [vmem:[#allocation2] sm:$0xff] %vm333, %v332
        %v335 = vld [vmem:[#allocation3] sm:$0xff]
        %v336 = vmul.f32 %v321, %v321
        %v337 = vmul.f32 %v323, %v323
        %v338 = vadd.f32 %v336, %v337
        %339 = vadd.xlane.f32.xlu0 %v338
        %v340 = vpop.xlane.xlu0 %339
        %v341 = vadd.f32 %v335, %v340
        %342 = vst.msk [vmem:[#allocation3] sm:$0xff] %vm333, %v341
      $region44: #{conv_batch_norm.1} parent=35 // pred_fallthru
        _
      %p343 = scmp.eq.s32.totalorder %s19, 1
      // Predicated region
      $region45: #{conv_batch_norm.1} parent=35 // pred_check
        %p344 = pneg %p343
      $region46: #{conv_batch_norm.1} parent=35 // pred_check_branch
        %346 = sbr.rel (%p344) target = $region48
      $region47: #{conv_batch_norm.1} parent=35 // pred_region
        %v347 = vld [vmem:[#allocation4] sm:$0xff]
        %349 = vset.pattern.permute.xlu0 0
        %350 = vperm.xlu0 %349, %v347
        %v351 = vpop.permute.xlu0 %350
        %v353 = vmul.f32 %v321, %v351
        %v354 = vmul.f32 %v323, %v351
        %v355 = vld [vmem:[#allocation5] sm:$0xff]
        %357 = vset.pattern.permute.xlu0 0
        %358 = vperm.xlu0 %357, %v355
        %v359 = vpop.permute.xlu0 %358
        %v361 = vadd.f32 %v353, %v359
        %v362 = vadd.f32 %v354, %v359
        %v363 = vmax.f32 %v361, 0.0
        %v364 = vmax.f32 %v362, 0.0
        %365 = vst [vmem:[%s220] sm:$0xff] %v363
        %366 = vst [vmem:[%s220 + $0x8] sm:$0xff] %v364
      $region48: #{conv_batch_norm.1} parent=35 // pred_fallthru
        _
      %v367 = vld [vmem:[%s1] sm:$0xff]
      %s368 = scalar_lea.vmem %s212, 80
      %v369 = vld [vmem:[%s368] sm:$0xff]
      %v370 = vld [vmem:[%s368 + $0x8] sm:$0xff]
      %v371 = vld [vmem:[%s368 + $0x10] sm:$0xff]
      %v372 = vld [vmem:[%s368 + $0x18] sm:$0xff]
      %v373 = vld [vmem:[%s368 + $0x20] sm:$0xff]
      %v374 = vld [vmem:[%s368 + $0x28] sm:$0xff]
      %v375 = vld [vmem:[%s368 + $0x30] sm:$0xff]
      %v376 = vld [vmem:[%s368 + $0x38] sm:$0xff]
      %v377 = vld [vmem:[%s368 + $0x40] sm:$0xf]
      %v378 = vld [vmem:[%s368 + $0x48] sm:$0xf]
      %v380 = vsel %vm243, %v367, 0
      %v383 = vsel %vm247, %v377, 0
      %v386 = vsel %vm247, %v378, 0
      %388 = vmatprep.subr.mxu0 %v370
      %389 = vmatpush1.msra.mxu0 %v369
      %390 = vmatprep.subr.mxu0 %v372
      %391 = vmatpush1.msra.mxu0 %v371
      %392 = vmatprep.subr.mxu0 %v374
      %393 = vmatpush1.msra.mxu0 %v373
      %394 = vmatprep.subr.mxu0 %v376
      %395 = vmatpush1.msra.mxu0 %v375
      %396 = vmatprep.subr.mxu0 %v386
      %397 = vmatpush1.msra.mxu0 %v383
      %398 = vmatprep.subr.mxu0 0.0
      %399 = vmatpush1.msra.mxu0 0.0
      %400 = vmatprep.subr.mxu0 0.0
      %401 = vmatpush1.msra.mxu0 0.0
      %402 = vmatprep.subr.mxu0 0.0
      %403 = vmatpush1.msra.mxu0 0.0
      %404 = vmatprep.subr.mxu0 0.0
      %405 = vmatpush1.msra.mxu0 0.0
      %406 = vmatprep.subr.mxu0 0.0
      %407 = vmatpush1.msra.mxu0 0.0
      %408 = vmatprep.subr.mxu0 0.0
      %409 = vmatpush1.msra.mxu0 0.0
      %410 = vmatprep.subr.mxu0 0.0
      %411 = vmatpush1.msra.mxu0 0.0
      %412 = vmatprep.subr.mxu0 0.0
      %413 = vmatpush1.msra.mxu0 0.0
      %414 = vmatprep.subr.mxu0 0.0
      %415 = vmatpush1.msra.mxu0 0.0
      %416 = vmatprep.subr.mxu0 0.0
      %417 = vmatpush1.msra.mxu0 0.0
      %418 = vmatprep.subr.mxu0 0.0
      %419 = vmatpush1.msra.mxu0 0.0
      %420 = vmatprep.subr.mxu0 0.0
      %421 = vmatpush1.msra.mxu0 0.0
      %422 = vmatprep.subr.mxu0 0.0
      %423 = vmatpush1.msra.mxu0 0.0
      %424 = vmatprep.subr.mxu0 0.0
      %425 = vmatpush1.msra.mxu0 0.0
      %426 = vmatprep.subr.mxu0 0.0
      %427 = vmatpush1.msra.mxu0 0.0
      %428 = vmatprep.subr.mxu0 0.0
      %429 = vmatpush1.msra.mxu0 0.0
      %430 = vmatprep.subr.mxu0 0.0
      %431 = vmatpush1.msra.mxu0 0.0
      %432 = vmatprep.subr.mxu0 0.0
      %433 = vmatpush1.msra.mxu0 0.0
      %434 = vmatprep.subr.mxu0 0.0
      %435 = vmatpush1.msra.mxu0 0.0
      %436 = vmatprep.subr.mxu0 0.0
      %437 = vmatpush1.msra.mxu0 0.0
      %438 = vmatprep.subr.mxu0 0.0
      %439 = vmatpush1.msra.mxu0 0.0
      %440 = vmatprep.subr.mxu0 0.0
      %441 = vmatpush1.msra.mxu0 0.0
      %442 = vmatprep.subr.mxu0 0.0
      %443 = vmatpush1.msra.mxu0 0.0
      %444 = vmatprep.subr.mxu0 0.0
      %445 = vmatpush1.msra.mxu0 0.0
      %446 = vmatprep.subr.mxu0 0.0
      %447 = vmatpush1.msra.mxu0 0.0
      %448 = vmatprep.subr.mxu0 0.0
      %449 = vmatpush1.msra.mxu0 0.0
      %450 = vmatprep.subr.mxu0 0.0
      %451 = vmatpush1.msra.mxu0 0.0
      %452 = vmatprep.mubr.f32.mxu0 0.0
      %453 = vmatmul.mubr.f32.gmra.mrb[0].mxu0 %v380
      %v454 = vpop.f32.mrb[0].mxu0
      %v455 = vadd.f32 0.0, %v454
      %v456 = vpop.f32.mrb[0].mxu0
      %v457 = vadd.f32 0.0, %v456
      %458 = vdwg.mxu0
      // Predicated region
      $region49: #{conv_batch_norm.1} parent=35 // pred_check
        %p459 = pneg %p223
      $region50: #{conv_batch_norm.1} parent=35 // pred_check_branch
        %461 = sbr.rel (%p459) target = $region52
      $region51: #{conv_batch_norm.1} parent=35 // pred_region
        %v462 = vld [vmem:[#allocation2] sm:$0xff]
        %v463 = vadd.f32 %v455, %v457
        %464 = vadd.xlane.f32.xlu0 %v463
        %v465 = vpop.xlane.xlu0 %464
        %v466 = vadd.f32 %v462, %v465
        %vm467 = vcmask 7168
        %468 = vst.msk [vmem:[#allocation2] sm:$0xff] %vm467, %v466
        %v469 = vld [vmem:[#allocation3] sm:$0xff]
        %v470 = vmul.f32 %v455, %v455
        %v471 = vmul.f32 %v457, %v457
        %v472 = vadd.f32 %v470, %v471
        %473 = vadd.xlane.f32.xlu0 %v472
        %v474 = vpop.xlane.xlu0 %473
        %v475 = vadd.f32 %v469, %v474
        %476 = vst.msk [vmem:[#allocation3] sm:$0xff] %vm467, %v475
      $region52: #{conv_batch_norm.1} parent=35 // pred_fallthru
        _
      // Predicated region
      $region53: #{conv_batch_norm.1} parent=35 // pred_check
        %p477 = pneg %p343
      $region54: #{conv_batch_norm.1} parent=35 // pred_check_branch
        %479 = sbr.rel (%p477) target = $region56
      $region55: #{conv_batch_norm.1} parent=35 // pred_region
        %v480 = vld [vmem:[#allocation4] sm:$0xff]
        %482 = vset.pattern.permute.xlu0 0
        %483 = vperm.xlu0 %482, %v480
        %v484 = vpop.permute.xlu0 %483
        %v486 = vmul.f32 %v455, %v484
        %v487 = vmul.f32 %v457, %v484
        %v488 = vld [vmem:[#allocation5] sm:$0xff]
        %490 = vset.pattern.permute.xlu0 0
        %491 = vperm.xlu0 %490, %v488
        %v492 = vpop.permute.xlu0 %491
        %v494 = vadd.f32 %v486, %v492
        %v495 = vadd.f32 %v487, %v492
        %v496 = vmax.f32 %v494, 0.0
        %v497 = vmax.f32 %v495, 0.0
        %s498 = scalar_lea.vmem %s220, 16
        %499 = vst [vmem:[%s498] sm:$0xff] %v496
        %500 = vst [vmem:[%s498 + $0x8] sm:$0xff] %v497
      $region56: #{conv_batch_norm.1} parent=35 // pred_fallthru
        _
      // Predicated region
      $region57: #{conv_batch_norm.1} parent=35 // pred_check
        _
      $region58: #{conv_batch_norm.1} parent=35 // pred_check_branch
        %502 = sbr.rel (%p225) target = $region60
      $region59: #{conv_batch_norm.1} parent=35 // pred_region
        %v503 = vld [vmem:[#allocation2] sm:$0xff]
        %v504 = vmul.f32 %v503, 0.001953125
        %v505 = vld [vmem:[#allocation3] sm:$0xff]
        %v506 = vmul.f32 %v505, 0.001953125
        %v507 = vmul.f32 %v504, %v504
        %v508 = vsub.f32 %v506, %v507
        %v509 = vld [vmem:[%s2] sm:$0xff]
        %v510 = vadd.f32 %v508, 1e-05
        %v511 = vrsqrt.pop %v510
        %v512 = vmul.f32 %v509, %v511
        %vm513 = vcmask 7168
        %514 = vst.msk [vmem:[#allocation4] sm:$0xff] %vm513, %v512
        %v515 = vld [vmem:[%s3] sm:$0xff]
        %v516 = vmul.f32 %v504, %v512
        %v517 = vsub.f32 %v515, %v516
        %518 = vst.msk [vmem:[#allocation5] sm:$0xff] %vm513, %v517
      $region60: #{conv_batch_norm.1} parent=35 // pred_fallthru
        _
      %s519 = smul.u32 %s20, %s19
      %s520 = smul.u32 2, %s519
      %p521 = scmp.lt.s32.totalorder %s520, 1
      %s522 = scalar_select %p521, %s520, 1
      %s523 = smul.addr %s522, 2
      %s524 = smul.addr %s523, 8
      %s525 = scalar_lea.vmem %s4, %s524
      // Predicated region
      $region61: #{conv_batch_norm.1} parent=35 // pred_check
        %p526 = pneg %p136
      $region62: #{conv_batch_norm.1} parent=35 // pred_check_branch
        %528 = sbr.rel (%p526) target = $region64
      $region63: #{conv_batch_norm.1} parent=35 // pred_region
        %s529 = smul.u32 %s20, %s19
        %s530 = smul.u32 2, %s529
      $region64: #{conv_batch_norm.1} parent=35 // pred_fallthru
        _
    $region36: #{conv_batch_norm.1} parent=5 // pred_fallthru
      _
    %p531 = scmp.le.s32.totalorder 2, %s10
    // Predicated region
    $region65: #{conv_batch_norm.1} parent=5 // pred_check
      %p532 = pneg %p531
    $region66: #{conv_batch_norm.1} parent=5 // pred_check_branch
      %534 = sbr.rel (%p532) target = $region68
    $region67: #{conv_batch_norm.1} parent=5 // pred_region
      %s535 = ssub.s32 %s10, 2
      // Predicated region
      $region69: #{conv_batch_norm.1} parent=67 // pred_check
        %p536 = pneg %p142
      $region70: #{conv_batch_norm.1} parent=67 // pred_check_branch
        %538 = sbr.rel (%p536) target = $region72
      $region71: #{conv_batch_norm.1} parent=67 // pred_region
        %s539 = smul.u32 %s22, %s21
        %s540 = smul.u32 2, %s539
        %p541 = scmp.lt.s32.totalorder %s540, 1
        %s542 = scalar_select %p541, %s540, 1
        %s543 = smul.addr %s542, 2
        %s544 = smul.addr %s543, 8
        %s545 = scalar_lea.vmem %s4, %s544
      $region72: #{conv_batch_norm.1} parent=67 // pred_fallthru
        _
    $region68: #{conv_batch_norm.1} parent=5 // pred_fallthru
      _
  $region6: #{conv_batch_norm.1} parent=0 // loop_footer
    %s14 = sadd.s32 1, %s10
  $region7: #{conv_batch_norm.1} parent=0 // loop_footer_branch
    %9 = sbr.rel target = $region3
  $region8: #{conv_batch_norm.1} parent=0 // loop_exit
    _

</llo_original>
